<compile_context>
chip_gen: v7x
topology: tpu7x:2x2x1
jax: 0.10.0
libtpu: 0.0.40
codegen_flags: <defaults>
</compile_context>

<pallas_src>
import math

import jax
import jax.numpy as jnp
from jax.experimental import pallas as pl
from jax.experimental.pallas import tpu as pltpu

EPS = 1e-6
# Conservative double-buffered working-set budget (bytes): fits v5e's 16 MiB
# scoped-VMEM default with headroom; v6e/v7x defaults are larger.
_VMEM_BUDGET = 12 * 1024 * 1024


def _round_up(x, m):
    return ((x + m - 1) // m) * m


def _pick_tm(B, dmodel, N):
    """Largest sublane-aligned B tile whose double-buffered f32 working set fits VMEM."""
    fixed = 2 * 4 * (dmodel * N + N)       # resident weight + bias
    per_row = 2 * 4 * (dmodel + N)         # x row + output row (double-buffered)
    cap = (_VMEM_BUDGET - fixed) // per_row
    cap = int(max(8, min(1024, (cap // 8) * 8)))
    if B <= cap:
        return B                           # single full block: no padding, no partials
    # Balanced tiles: minimize dead rows in the masked final partial block.
    n_tiles = pl.cdiv(B, cap)
    return _round_up(pl.cdiv(B, n_tiles), 8)


def _linear_softplus_kernel(x_ref, w_ref, b_ref, alpha_ref):
    # Linear for this (TM, N) output tile: [TM, dmodel] @ [dmodel, N] + [1, N]
    acts = (
        jnp.dot(x_ref[...], w_ref[...], preferred_element_type=jnp.float32)
        + b_ref[...]
    )
    # softplus(x) = log(1 + exp(x)) = logaddexp(x, 0)  (numerically stable)
    alpha_ref[...] = jnp.logaddexp(acts, 0.0) + EPS


def _softplus_kernel(x_ref, alpha_ref):
    alpha_ref[...] = jnp.logaddexp(x_ref[...].astype(jnp.float32), 0.0) + EPS


def prepare_dirichlet_params(weight_nd, bias_n):
    """One-time parameter prep, hoisted out of the per-call forward.

    weight_nd: [N, dmodel]  (PyTorch nn.Linear layout)
    bias_n:    [N]
    returns (weight [dmodel, N], bias [1, N]) as float32.
    """
    weight = jnp.asarray(weight_nd, jnp.float32).T
    bias = jnp.asarray(bias_n, jnp.float32).reshape(1, -1)
    return weight, bias


def dirichlet_profile_forward(x, weight_dn, bias_1n):
    """alphas = softplus(x @ W + b) + 1e-6  (Dirichlet concentration parameters).

    x:         [B, dmodel] float32
    weight_dn: [dmodel, N] float32   (from prepare_dirichlet_params)
    bias_1n:   [1, N]      float32
    returns    [B, N]      float32, strictly positive
    """
    B, dmodel = x.shape
    d2, N = weight_dn.shape
    assert d2 == dmodel
    assert bias_1n.shape == (1, N)

    tm = _pick_tm(B, dmodel, N)
    grid = (pl.cdiv(B, tm),)

    cost = pl.CostEstimate(
        flops=2 * B * dmodel * N,
        transcendentals=2 * B * N,                 # exp + log1p per output element
        bytes_accessed=4 * (B * dmodel + dmodel * N + N + B * N),
    )

    return pl.pallas_call(
        _linear_softplus_kernel,
        out_shape=jax.ShapeDtypeStruct((B, N), jnp.float32),
        grid_spec=pltpu.PrefetchScalarGridSpec(
            num_scalar_prefetch=0,
            grid=grid,
            in_specs=[
                pl.BlockSpec((tm, dmodel), lambda i: (i, 0)),
                pl.BlockSpec((dmodel, N), lambda i: (0, 0)),   # VMEM-resident across B tiles
                pl.BlockSpec((1, N), lambda i: (0, 0)),        # VMEM-resident bias
            ],
            out_specs=pl.BlockSpec((tm, N), lambda i: (i, 0)),
        ),
        compiler_params=pltpu.CompilerParams(
            dimension_semantics=("parallel",),
        ),
        cost_estimate=cost,
    )(x, weight_dn, bias_1n)


def dirichlet_profile_activation(alphas):
    """dmodel=None path of the module: alphas = softplus(alphas) + eps (elementwise)."""
    x = jnp.asarray(alphas, jnp.float32)
    orig_shape = x.shape
    x2 = x.reshape(-1, orig_shape[-1]) if x.ndim >= 2 else x.reshape(1, -1)
    B, N = x2.shape
    tm = _pick_tm(B, 0, N)
    grid = (pl.cdiv(B, tm),)
    out = pl.pallas_call(
        _softplus_kernel,
        out_shape=jax.ShapeDtypeStruct((B, N), jnp.float32),
        grid_spec=pltpu.PrefetchScalarGridSpec(
            num_scalar_prefetch=0,
            grid=grid,
            in_specs=[pl.BlockSpec((tm, N), lambda i: (i, 0))],
            out_specs=pl.BlockSpec((tm, N), lambda i: (i, 0)),
        ),
        compiler_params=pltpu.CompilerParams(dimension_semantics=("parallel",)),
    )(x2)
    return out.reshape(orig_shape)


if __name__ == "__main__":
    # Shapes consistent with the module: dmodel = 32, input_shape = (3, 21, 21)
    # -> num_components = 1323 (non-multiple of 128; exercises the masked-tail path).
    B = 16
    dmodel = 32
    input_shape = (3, 21, 21)
    num_components = input_shape[0] * input_shape[1] * input_shape[2]  # 1323

    key = jax.random.PRNGKey(0)
    kx, kw, kb, ka = jax.random.split(key, 4)

    # Deterministic PyTorch-Linear-style init: U(-1/sqrt(dmodel), 1/sqrt(dmodel)),
    # stored in PyTorch layout [N, dmodel] and prepared once (hoisted out of forward).
    bound = 1.0 / math.sqrt(dmodel)
    weight_pt = jax.random.uniform(
        kw, (num_components, dmodel), jnp.float32, -bound, bound
    )
    bias_pt = jax.random.uniform(kb, (num_components,), jnp.float32, -bound, bound)
    x = jax.random.normal(kx, (B, dmodel), jnp.float32)

    weight_dn, bias_1n = prepare_dirichlet_params(weight_pt, bias_pt)

    # dmodel-set path: linear + softplus + eps.
    alphas = dirichlet_profile_forward(x, weight_dn, bias_1n)
    alphas = jax.block_until_ready(alphas)

    ref = jax.nn.softplus(x @ weight_dn + bias_1n) + EPS
    assert alphas.shape == (B, num_components)
    assert bool(jnp.all(alphas > 0.0))
    assert bool(jnp.allclose(alphas, ref, atol=1e-5, rtol=1e-5))

    # dmodel=None path (module default): forward is just softplus(alphas) + eps.
    raw = jax.random.normal(ka, (B, num_components), jnp.float32)
    a2 = jax.block_until_ready(dirichlet_profile_activation(raw))
    ref2 = jax.nn.softplus(raw) + EPS
    assert a2.shape == raw.shape
    assert bool(jnp.allclose(a2, ref2, atol=1e-6, rtol=1e-6))

    print("KERNEL_OK")
</pallas_src>

<mosaic_0001>
module attributes {stable_mosaic.version = 11 : i64} {
  func.func @_linear_softplus_kernel(%arg0: i32, %arg1: memref<16x32xf32, #tpu.memory_space<vmem>>, %arg2: memref<32x1323xf32, #tpu.memory_space<vmem>>, %arg3: memref<1x1323xf32, #tpu.memory_space<vmem>>, %arg4: memref<16x1323xf32, #tpu.memory_space<vmem>>) attributes {dimension_semantics = [#tpu.dimension_semantics<parallel>], iteration_bounds = array<i64: 1>, scalar_prefetch = 0 : i64, scratch_operands = 0 : i64, tpu.core_type = #tpu.core_type<tc>, window_params = [{transform_indices = @transform_0, window_bounds = array<i64: 16, 32>}, {pipeline_mode = #tpu.pipeline_mode<synchronous>, transform_indices = @transform_1, window_bounds = array<i64: 32, 1323>}, {pipeline_mode = #tpu.pipeline_mode<synchronous>, transform_indices = @transform_2, window_bounds = array<i64: 1, 1323>}, {transform_indices = @transform_3, window_bounds = array<i64: 16, 1323>}]} {
    %c0 = arith.constant 0 : index
    %c0_0 = arith.constant 0 : index
    %0 = vector.load %arg1[%c0, %c0_0] : memref<16x32xf32, #tpu.memory_space<vmem>>, vector<16x32xf32>
    %c0_1 = arith.constant 0 : index
    %c0_2 = arith.constant 0 : index
    %1 = vector.load %arg2[%c0_1, %c0_2] : memref<32x1323xf32, #tpu.memory_space<vmem>>, vector<32x1323xf32>
    %cst = arith.constant dense<0.000000e+00> : vector<16x1323xf32>
    %2 = tpu.matmul %0, %1, %cst {dimension_numbers = #tpu.dot_dimension_numbers<[1], [0], [0], [1], [0, 0, 1, 1], [], []>} : vector<16x32xf32>, vector<32x1323xf32>, vector<16x1323xf32> -> vector<16x1323xf32>
    %c0_3 = arith.constant 0 : index
    %c0_4 = arith.constant 0 : index
    %3 = vector.load %arg3[%c0_3, %c0_4] : memref<1x1323xf32, #tpu.memory_space<vmem>>, vector<1x1323xf32>
    %4 = vector.broadcast %3 : vector<1x1323xf32> to vector<16x1323xf32>
    %5 = arith.addf %2, %4 : vector<16x1323xf32>
    %cst_5 = arith.constant 0.000000e+00 : f32
    %6 = vector.broadcast %cst_5 : f32 to vector<16x1323xf32>
    %7 = arith.maximumf %5, %6 : vector<16x1323xf32>
    %8 = vector.broadcast %cst_5 : f32 to vector<16x1323xf32>
    %9 = arith.subf %5, %8 : vector<16x1323xf32>
    %10 = arith.cmpf one, %9, %9 : vector<16x1323xf32>
    %11 = vector.broadcast %cst_5 : f32 to vector<16x1323xf32>
    %12 = arith.addf %5, %11 : vector<16x1323xf32>
    %13 = math.absf %9 : vector<16x1323xf32>
    %cst_6 = arith.constant 0.000000e+00 : f32
    %14 = vector.broadcast %cst_6 : f32 to vector<16x1323xf32>
    %15 = arith.subf %14, %13 : vector<16x1323xf32>
    %16 = math.exp %15 : vector<16x1323xf32>
    %17 = math.log1p %16 : vector<16x1323xf32>
    %18 = arith.addf %7, %17 : vector<16x1323xf32>
    %19 = arith.select %10, %12, %18 : vector<16x1323xi1>, vector<16x1323xf32>
    %cst_7 = arith.constant 9.99999997E-7 : f32
    %20 = vector.broadcast %cst_7 : f32 to vector<16x1323xf32>
    %21 = arith.addf %19, %20 : vector<16x1323xf32>
    %c0_8 = arith.constant 0 : index
    %c0_9 = arith.constant 0 : index
    %22 = vector.load %arg4[%c0_8, %c0_9] : memref<16x1323xf32, #tpu.memory_space<vmem>>, vector<16x1323xf32>
    tpu.vector_store %arg4[%c0_8, %c0_9], %21 {strides = array<i32>} : memref<16x1323xf32, #tpu.memory_space<vmem>>, vector<16x1323xf32>,
    return
  }
  func.func @transform_0(%arg0: i32) -> (i32, i32) {
    %c0_i32 = arith.constant 0 : i32
    %c0_i32_0 = arith.constant 0 : i32
    return %arg0, %c0_i32 : i32, i32
  }
  func.func @transform_1(%arg0: i32) -> (i32, i32) {
    %c0_i32 = arith.constant 0 : i32
    %c0_i32_0 = arith.constant 0 : i32
    %c0_i32_1 = arith.constant 0 : i32
    return %c0_i32, %c0_i32_0 : i32, i32
  }
  func.func @transform_2(%arg0: i32) -> (i32, i32) {
    %c0_i32 = arith.constant 0 : i32
    %c0_i32_0 = arith.constant 0 : i32
    %c0_i32_1 = arith.constant 0 : i32
    return %c0_i32, %c0_i32_0 : i32, i32
  }
  func.func @transform_3(%arg0: i32) -> (i32, i32) {
    %c0_i32 = arith.constant 0 : i32
    %c0_i32_0 = arith.constant 0 : i32
    return %arg0, %c0_i32 : i32, i32
  }
}

</mosaic_0001>

<llo_original>
// kernel: tpu_custom_call.1
$region0: #{tpu_custom_call.1}
  #allocation0 [shape = 'u32[]', space=smem, size = 0x4, offset = 0x4, fixed_abs, tag = 'smem constant byte address 0x4 - core index']
  #allocation1 [shape = 'u32[144,128]{1,0:T(1,128)}', space=vmem, size = 0x12000, scoped, tag = 'internal scratch']
  %s0 = inlined_call_operand.hbm [shape: f32[16,32], index: 0, kind: input, shape index: {}]
  %s1 = inlined_call_operand.hbm [shape: f32[32,1323], index: 1, kind: input, shape index: {}]
  %s2 = inlined_call_operand.hbm [shape: f32[1,1323], index: 2, kind: input, shape index: {}]
  %s3 = inlined_call_operand.hbm [shape: f32[16,1323], index: 3, kind: output, shape index: {}]
  %s4 = sld [smem:[#allocation0]]
  $region34: #{tpu_custom_call.1} parent=0
    _
  %s6 = ssub.s32 1, %s4
  %s7 = scalar_select 0, %s6, %s4
  $region1: #{tpu_custom_call.1} parent=0
    #allocation2 [shape = 'u8[8192]{0}', space=vmem, size = 0x2000, scoped, tag = 'input window, operand 0, single buffered']
    #allocation3 [shape = 's32[1]{0}', space=sflag, size = 0x4, scoped, tag = 'scoped memory for tpu_custom_call.1']
    #allocation4 [shape = 's32[1]{0}', space=sflag, size = 0x4, scoped, tag = 'scoped memory for tpu_custom_call.1']
    #allocation5 [shape = 'u8[180224]{0}', space=vmem, size = 0x2c000, scoped, tag = 'input window, operand 1, single buffered']
    #allocation6 [shape = 's32[1]{0}', space=sflag, size = 0x4, scoped, tag = 'scoped memory for tpu_custom_call.1']
    #allocation7 [shape = 'u8[5632]{0}', space=vmem, size = 0x1800, scoped, tag = 'input window, operand 2, single buffered']
    #allocation8 [shape = 'u8[90112]{0}', space=vmem, size = 0x16000, scoped, tag = 'output window, operand 0, single buffered']
    %8 = vsyncpa [#allocation3], 0
    %9 = vsyncpa [#allocation6], 0
    %10 = vsyncpa [#allocation4], 0
    // Predicated region
    $region2: #{tpu_custom_call.1} parent=1 // pred_check
      _
    $region3: #{tpu_custom_call.1} parent=1 // pred_check_branch
      %12 = sbr.rel (0) target = $region5
    $region4: #{tpu_custom_call.1} parent=1 // pred_region
      %s14 = ssub.s32 256, 256
      %15 = vsyncadd [#allocation3], %s14
      %s16 = sshll.u32 [#allocation2], 4
      %s17 = int_to_ptr.vmem [resolvable:$true] %s16
      %22 = dma.hbm_to_vmem [thread:$0]  %s0, 256, %s17, [#allocation3], 128, 128, 8
    $region5: #{tpu_custom_call.1} parent=1 // pred_fallthru
      _
    // Predicated region
    $region6: #{tpu_custom_call.1} parent=1 // pred_check
      _
    $region7: #{tpu_custom_call.1} parent=1 // pred_check_branch
      %24 = sbr.rel (0) target = $region9
    $region8: #{tpu_custom_call.1} parent=1 // pred_region
      %s26 = ssub.s32 5632, 5632
      %27 = vsyncadd [#allocation6], %s26
      %s28 = sshll.u32 [#allocation5], 4
      %s29 = int_to_ptr.vmem [resolvable:$true] %s28
      %34 = dma.hbm_to_vmem [thread:$0]  %s1, 5632, %s29, [#allocation6], 1408, 1408, 88
    $region9: #{tpu_custom_call.1} parent=1 // pred_fallthru
      _
    // Predicated region
    $region10: #{tpu_custom_call.1} parent=1 // pred_check
      _
    $region11: #{tpu_custom_call.1} parent=1 // pred_check_branch
      %36 = sbr.rel (0) target = $region13
    $region12: #{tpu_custom_call.1} parent=1 // pred_region
      %s38 = ssub.s32 176, 176
      %39 = vsyncadd [#allocation6], %s38
      %s41 = sshll.u32 [#allocation7], 4
      %s42 = int_to_ptr.vmem [resolvable:$true] %s41
      %44 = dma.hbm_to_vmem [thread:$0]  %s2, 176, %s42, [#allocation6]
    $region13: #{tpu_custom_call.1} parent=1 // pred_fallthru
      _
    // Predicated region
    $region14: #{tpu_custom_call.1} parent=1 // pred_check
      _
    $region15: #{tpu_custom_call.1} parent=1 // pred_check_branch
      %46 = sbr.rel (0) target = $region17
    $region16: #{tpu_custom_call.1} parent=1 // pred_region
      %47 = dma.done [#allocation3], 256
    $region17: #{tpu_custom_call.1} parent=1 // pred_fallthru
      _
    // Predicated region
    $region18: #{tpu_custom_call.1} parent=1 // pred_check
      _
    $region19: #{tpu_custom_call.1} parent=1 // pred_check_branch
      %49 = sbr.rel (0) target = $region21
    $region20: #{tpu_custom_call.1} parent=1 // pred_region
      %50 = dma.done [#allocation6], 5632
    $region21: #{tpu_custom_call.1} parent=1 // pred_fallthru
      _
    // Predicated region
    $region22: #{tpu_custom_call.1} parent=1 // pred_check
      _
    $region23: #{tpu_custom_call.1} parent=1 // pred_check_branch
      %52 = sbr.rel (0) target = $region25
    $region24: #{tpu_custom_call.1} parent=1 // pred_region
      %53 = dma.done [#allocation6], 176
    $region25: #{tpu_custom_call.1} parent=1 // pred_fallthru
      _
    %v54 = vld [vmem:[#allocation2] sm:$0xff]
    %v55 = vld [vmem:[#allocation2 + $0x8] sm:$0xff]
    %v56 = vld [vmem:[#allocation5] sm:$0xff]
    %v57 = vld [vmem:[#allocation5 + $0x8] sm:$0xff]
    %v58 = vld [vmem:[#allocation5 + $0x10] sm:$0xff]
    %v59 = vld [vmem:[#allocation5 + $0x18] sm:$0xff]
    %v60 = vld [vmem:[#allocation5 + $0x20] sm:$0xff]
    %v61 = vld [vmem:[#allocation5 + $0x28] sm:$0xff]
    %v62 = vld [vmem:[#allocation5 + $0x30] sm:$0xff]
    %v63 = vld [vmem:[#allocation5 + $0x38] sm:$0xff]
    %v64 = vld [vmem:[#allocation5 + $0x40] sm:$0xff]
    %v65 = vld [vmem:[#allocation5 + $0x48] sm:$0xff]
    %v66 = vld [vmem:[#allocation5 + $0x50] sm:$0xff]
    %v67 = vld [vmem:[#allocation5 + $0x58] sm:$0xff]
    %v68 = vld [vmem:[#allocation5 + $0x60] sm:$0xff]
    %v69 = vld [vmem:[#allocation5 + $0x68] sm:$0xff]
    %v70 = vld [vmem:[#allocation5 + $0x70] sm:$0xff]
    %v71 = vld [vmem:[#allocation5 + $0x78] sm:$0xff]
    %v72 = vld [vmem:[#allocation5 + $0x80] sm:$0xff]
    %v73 = vld [vmem:[#allocation5 + $0x88] sm:$0xff]
    %v74 = vld [vmem:[#allocation5 + $0x90] sm:$0xff]
    %v75 = vld [vmem:[#allocation5 + $0x98] sm:$0xff]
    %v76 = vld [vmem:[#allocation5 + $0xa0] sm:$0xff]
    %v77 = vld [vmem:[#allocation5 + $0xa8] sm:$0xff]
    %v78 = vld [vmem:[#allocation5 + $0xb0] sm:$0xff]
    %v79 = vld [vmem:[#allocation5 + $0xb8] sm:$0xff]
    %v80 = vld [vmem:[#allocation5 + $0xc0] sm:$0xff]
    %v81 = vld [vmem:[#allocation5 + $0xc8] sm:$0xff]
    %v82 = vld [vmem:[#allocation5 + $0xd0] sm:$0xff]
    %v83 = vld [vmem:[#allocation5 + $0xd8] sm:$0xff]
    %v84 = vld [vmem:[#allocation5 + $0xe0] sm:$0xff]
    %v85 = vld [vmem:[#allocation5 + $0xe8] sm:$0xff]
    %v86 = vld [vmem:[#allocation5 + $0xf0] sm:$0xff]
    %v87 = vld [vmem:[#allocation5 + $0xf8] sm:$0xff]
    %v88 = vld [vmem:[#allocation5 + $0x100] sm:$0xff]
    %v89 = vld [vmem:[#allocation5 + $0x108] sm:$0xff]
    %v90 = vld [vmem:[#allocation5 + $0x110] sm:$0xff]
    %v91 = vld [vmem:[#allocation5 + $0x118] sm:$0xff]
    %v92 = vld [vmem:[#allocation5 + $0x120] sm:$0xff]
    %v93 = vld [vmem:[#allocation5 + $0x128] sm:$0xff]
    %v94 = vld [vmem:[#allocation5 + $0x130] sm:$0xff]
    %v95 = vld [vmem:[#allocation5 + $0x138] sm:$0xff]
    %v96 = vld [vmem:[#allocation5 + $0x140] sm:$0xff]
    %v97 = vld [vmem:[#allocation5 + $0x148] sm:$0xff]
    %v98 = vld [vmem:[#allocation5 + $0x150] sm:$0xff]
    %v99 = vld [vmem:[#allocation5 + $0x158] sm:$0xff]
    %v100 = vld [vmem:[#allocation7] sm:$0xff]
    %v101 = vld [vmem:[#allocation7 + $0x8] sm:$0x7]
    %v104 = vlaneseq
    %v105 = vshrl.u32 %v104, 7
    %v106 = vsub.s32 0, %v105
    %v107 = vrot.slane %v100, %v106
    %v108 = vlaneseq
    %v109 = vshrl.u32 %v108, 7
    %v110 = vsub.s32 1, %v109
    %v111 = vrot.slane %v100, %v110
    %v112 = vlaneseq
    %v113 = vshrl.u32 %v112, 7
    %v114 = vsub.s32 2, %v113
    %v115 = vrot.slane %v100, %v114
    %v116 = vlaneseq
    %v117 = vshrl.u32 %v116, 7
    %v118 = vsub.s32 3, %v117
    %v119 = vrot.slane %v100, %v118
    %v120 = vlaneseq
    %v121 = vshrl.u32 %v120, 7
    %v122 = vsub.s32 4, %v121
    %v123 = vrot.slane %v100, %v122
    %v124 = vlaneseq
    %v125 = vshrl.u32 %v124, 7
    %v126 = vsub.s32 5, %v125
    %v127 = vrot.slane %v100, %v126
    %v128 = vlaneseq
    %v129 = vshrl.u32 %v128, 7
    %v130 = vsub.s32 6, %v129
    %v131 = vrot.slane %v100, %v130
    %v132 = vlaneseq
    %v133 = vshrl.u32 %v132, 7
    %v134 = vsub.s32 7, %v133
    %v135 = vrot.slane %v100, %v134
    %v136 = vlaneseq
    %v137 = vshrl.u32 %v136, 7
    %v138 = vsub.s32 0, %v137
    %v139 = vrot.slane %v101, %v138
    %v140 = vlaneseq
    %v141 = vshrl.u32 %v140, 7
    %v142 = vsub.s32 1, %v141
    %v143 = vrot.slane %v101, %v142
    %v144 = vlaneseq
    %v145 = vshrl.u32 %v144, 7
    %v146 = vsub.s32 2, %v145
    %v147 = vrot.slane %v101, %v146
    %vm159 = vcmask 261120
    %v161 = vsel %vm159, %v54, 0
    %v164 = vsel %vm159, %v55, 0
    %166 = vmatprep.subr.mxu0 %v57
    %167 = vmatpush1.msra.mxu0 %v56
    %168 = vmatprep.subr.mxu0 %v68
    %169 = vmatpush1.msra.mxu0 %v67
    %170 = vmatprep.subr.mxu0 %v79
    %171 = vmatpush1.msra.mxu0 %v78
    %172 = vmatprep.subr.mxu0 %v90
    %173 = vmatpush1.msra.mxu0 %v89
    %174 = vmatprep.subr.mxu0 0.0
    %175 = vmatpush1.msra.mxu0 0.0
    %176 = vmatprep.subr.mxu0 0.0
    %177 = vmatpush1.msra.mxu0 0.0
    %178 = vmatprep.subr.mxu0 0.0
    %179 = vmatpush1.msra.mxu0 0.0
    %180 = vmatprep.subr.mxu0 0.0
    %181 = vmatpush1.msra.mxu0 0.0
    %182 = vmatprep.subr.mxu0 0.0
    %183 = vmatpush1.msra.mxu0 0.0
    %184 = vmatprep.subr.mxu0 0.0
    %185 = vmatpush1.msra.mxu0 0.0
    %186 = vmatprep.subr.mxu0 0.0
    %187 = vmatpush1.msra.mxu0 0.0
    %188 = vmatprep.subr.mxu0 0.0
    %189 = vmatpush1.msra.mxu0 0.0
    %190 = vmatprep.subr.mxu0 0.0
    %191 = vmatpush1.msra.mxu0 0.0
    %192 = vmatprep.subr.mxu0 0.0
    %193 = vmatpush1.msra.mxu0 0.0
    %194 = vmatprep.subr.mxu0 0.0
    %195 = vmatpush1.msra.mxu0 0.0
    %196 = vmatprep.subr.mxu0 0.0
    %197 = vmatpush1.msra.mxu0 0.0
    %198 = vmatprep.subr.mxu0 0.0
    %199 = vmatpush1.msra.mxu0 0.0
    %200 = vmatprep.subr.mxu0 0.0
    %201 = vmatpush1.msra.mxu0 0.0
    %202 = vmatprep.subr.mxu0 0.0
    %203 = vmatpush1.msra.mxu0 0.0
    %204 = vmatprep.subr.mxu0 0.0
    %205 = vmatpush1.msra.mxu0 0.0
    %206 = vmatprep.subr.mxu0 0.0
    %207 = vmatpush1.msra.mxu0 0.0
    %208 = vmatprep.subr.mxu0 0.0
    %209 = vmatpush1.msra.mxu0 0.0
    %210 = vmatprep.subr.mxu0 0.0
    %211 = vmatpush1.msra.mxu0 0.0
    %212 = vmatprep.subr.mxu0 0.0
    %213 = vmatpush1.msra.mxu0 0.0
    %214 = vmatprep.subr.mxu0 0.0
    %215 = vmatpush1.msra.mxu0 0.0
    %216 = vmatprep.subr.mxu0 0.0
    %217 = vmatpush1.msra.mxu0 0.0
    %218 = vmatprep.subr.mxu0 0.0
    %219 = vmatpush1.msra.mxu0 0.0
    %220 = vmatprep.subr.mxu0 0.0
    %221 = vmatpush1.msra.mxu0 0.0
    %222 = vmatprep.subr.mxu0 0.0
    %223 = vmatpush1.msra.mxu0 0.0
    %224 = vmatprep.subr.mxu0 0.0
    %225 = vmatpush1.msra.mxu0 0.0
    %226 = vmatprep.subr.mxu0 0.0
    %227 = vmatpush1.msra.mxu0 0.0
    %228 = vmatprep.subr.mxu0 0.0
    %229 = vmatpush1.msra.mxu0 0.0
    %230 = vmatprep.mubr.f32.mxu0 0.0
    %231 = vmatmul.mubr.f32.gmra.mrb[0].mxu0 %v161
    %v232 = vpop.f32.mrb[0].mxu0
    %v233 = vadd.f32 %v107, %v232
    %v234 = vpop.f32.mrb[0].mxu0
    %v235 = vadd.f32 %v111, %v234
    %236 = vmatprep.mubr.f32.mxu0 0.0
    %237 = vmatmul.mubr.f32.gmra.mrb[0].mxu0 %v164
    %v238 = vpop.f32.mrb[0].mxu0
    %v239 = vadd.f32 %v107, %v238
    %v240 = vpop.f32.mrb[0].mxu0
    %v241 = vadd.f32 %v111, %v240
    %242 = vdwg.mxu0
    %243 = vmatprep.subr.mxu0 %v59
    %244 = vmatpush1.msra.mxu0 %v58
    %245 = vmatprep.subr.mxu0 %v70
    %246 = vmatpush1.msra.mxu0 %v69
    %247 = vmatprep.subr.mxu0 %v81
    %248 = vmatpush1.msra.mxu0 %v80
    %249 = vmatprep.subr.mxu0 %v92
    %250 = vmatpush1.msra.mxu0 %v91
    %251 = vmatprep.subr.mxu0 0.0
    %252 = vmatpush1.msra.mxu0 0.0
    %253 = vmatprep.subr.mxu0 0.0
    %254 = vmatpush1.msra.mxu0 0.0
    %255 = vmatprep.subr.mxu0 0.0
    %256 = vmatpush1.msra.mxu0 0.0
    %257 = vmatprep.subr.mxu0 0.0
    %258 = vmatpush1.msra.mxu0 0.0
    %259 = vmatprep.subr.mxu0 0.0
    %260 = vmatpush1.msra.mxu0 0.0
    %261 = vmatprep.subr.mxu0 0.0
    %262 = vmatpush1.msra.mxu0 0.0
    %263 = vmatprep.subr.mxu0 0.0
    %264 = vmatpush1.msra.mxu0 0.0
    %265 = vmatprep.subr.mxu0 0.0
    %266 = vmatpush1.msra.mxu0 0.0
    %267 = vmatprep.subr.mxu0 0.0
    %268 = vmatpush1.msra.mxu0 0.0
    %269 = vmatprep.subr.mxu0 0.0
    %270 = vmatpush1.msra.mxu0 0.0
    %271 = vmatprep.subr.mxu0 0.0
    %272 = vmatpush1.msra.mxu0 0.0
    %273 = vmatprep.subr.mxu0 0.0
    %274 = vmatpush1.msra.mxu0 0.0
    %275 = vmatprep.subr.mxu0 0.0
    %276 = vmatpush1.msra.mxu0 0.0
    %277 = vmatprep.subr.mxu0 0.0
    %278 = vmatpush1.msra.mxu0 0.0
    %279 = vmatprep.subr.mxu0 0.0
    %280 = vmatpush1.msra.mxu0 0.0
    %281 = vmatprep.subr.mxu0 0.0
    %282 = vmatpush1.msra.mxu0 0.0
    %283 = vmatprep.subr.mxu0 0.0
    %284 = vmatpush1.msra.mxu0 0.0
    %285 = vmatprep.subr.mxu0 0.0
    %286 = vmatpush1.msra.mxu0 0.0
    %287 = vmatprep.subr.mxu0 0.0
    %288 = vmatpush1.msra.mxu0 0.0
    %289 = vmatprep.subr.mxu0 0.0
    %290 = vmatpush1.msra.mxu0 0.0
    %291 = vmatprep.subr.mxu0 0.0
    %292 = vmatpush1.msra.mxu0 0.0
    %293 = vmatprep.subr.mxu0 0.0
    %294 = vmatpush1.msra.mxu0 0.0
    %295 = vmatprep.subr.mxu0 0.0
    %296 = vmatpush1.msra.mxu0 0.0
    %297 = vmatprep.subr.mxu0 0.0
    %298 = vmatpush1.msra.mxu0 0.0
    %299 = vmatprep.subr.mxu0 0.0
    %300 = vmatpush1.msra.mxu0 0.0
    %301 = vmatprep.subr.mxu0 0.0
    %302 = vmatpush1.msra.mxu0 0.0
    %303 = vmatprep.subr.mxu0 0.0
    %304 = vmatpush1.msra.mxu0 0.0
    %305 = vmatprep.subr.mxu0 0.0
    %306 = vmatpush1.msra.mxu0 0.0
    %307 = vmatprep.mubr.f32.mxu0 0.0
    %308 = vmatmul.mubr.f32.gmra.mrb[0].mxu0 %v161
    %v309 = vpop.f32.mrb[0].mxu0
    %v310 = vadd.f32 %v115, %v309
    %v311 = vpop.f32.mrb[0].mxu0
    %v312 = vadd.f32 %v119, %v311
    %313 = vmatprep.mubr.f32.mxu0 0.0
    %314 = vmatmul.mubr.f32.gmra.mrb[0].mxu0 %v164
    %v315 = vpop.f32.mrb[0].mxu0
    %v316 = vadd.f32 %v115, %v315
    %v317 = vpop.f32.mrb[0].mxu0
    %v318 = vadd.f32 %v119, %v317
    %319 = vdwg.mxu0
    %320 = vmatprep.subr.mxu0 %v61
    %321 = vmatpush1.msra.mxu0 %v60
    %322 = vmatprep.subr.mxu0 %v72
    %323 = vmatpush1.msra.mxu0 %v71
    %324 = vmatprep.subr.mxu0 %v83
    %325 = vmatpush1.msra.mxu0 %v82
    %326 = vmatprep.subr.mxu0 %v94
    %327 = vmatpush1.msra.mxu0 %v93
    %328 = vmatprep.subr.mxu0 0.0
    %329 = vmatpush1.msra.mxu0 0.0
    %330 = vmatprep.subr.mxu0 0.0
    %331 = vmatpush1.msra.mxu0 0.0
    %332 = vmatprep.subr.mxu0 0.0
    %333 = vmatpush1.msra.mxu0 0.0
    %334 = vmatprep.subr.mxu0 0.0
    %335 = vmatpush1.msra.mxu0 0.0
    %336 = vmatprep.subr.mxu0 0.0
    %337 = vmatpush1.msra.mxu0 0.0
    %338 = vmatprep.subr.mxu0 0.0
    %339 = vmatpush1.msra.mxu0 0.0
    %340 = vmatprep.subr.mxu0 0.0
    %341 = vmatpush1.msra.mxu0 0.0
    %342 = vmatprep.subr.mxu0 0.0
    %343 = vmatpush1.msra.mxu0 0.0
    %344 = vmatprep.subr.mxu0 0.0
    %345 = vmatpush1.msra.mxu0 0.0
    %346 = vmatprep.subr.mxu0 0.0
    %347 = vmatpush1.msra.mxu0 0.0
    %348 = vmatprep.subr.mxu0 0.0
    %349 = vmatpush1.msra.mxu0 0.0
    %350 = vmatprep.subr.mxu0 0.0
    %351 = vmatpush1.msra.mxu0 0.0
    %352 = vmatprep.subr.mxu0 0.0
    %353 = vmatpush1.msra.mxu0 0.0
    %354 = vmatprep.subr.mxu0 0.0
    %355 = vmatpush1.msra.mxu0 0.0
    %356 = vmatprep.subr.mxu0 0.0
    %357 = vmatpush1.msra.mxu0 0.0
    %358 = vmatprep.subr.mxu0 0.0
    %359 = vmatpush1.msra.mxu0 0.0
    %360 = vmatprep.subr.mxu0 0.0
    %361 = vmatpush1.msra.mxu0 0.0
    %362 = vmatprep.subr.mxu0 0.0
    %363 = vmatpush1.msra.mxu0 0.0
    %364 = vmatprep.subr.mxu0 0.0
    %365 = vmatpush1.msra.mxu0 0.0
    %366 = vmatprep.subr.mxu0 0.0
    %367 = vmatpush1.msra.mxu0 0.0
    %368 = vmatprep.subr.mxu0 0.0
    %369 = vmatpush1.msra.mxu0 0.0
    %370 = vmatprep.subr.mxu0 0.0
    %371 = vmatpush1.msra.mxu0 0.0
    %372 = vmatprep.subr.mxu0 0.0
    %373 = vmatpush1.msra.mxu0 0.0
    %374 = vmatprep.subr.mxu0 0.0
    %375 = vmatpush1.msra.mxu0 0.0
    %376 = vmatprep.subr.mxu0 0.0
    %377 = vmatpush1.msra.mxu0 0.0
    %378 = vmatprep.subr.mxu0 0.0
    %379 = vmatpush1.msra.mxu0 0.0
    %380 = vmatprep.subr.mxu0 0.0
    %381 = vmatpush1.msra.mxu0 0.0
    %382 = vmatprep.subr.mxu0 0.0
    %383 = vmatpush1.msra.mxu0 0.0
    %384 = vmatprep.mubr.f32.mxu0 0.0
    %385 = vmatmul.mubr.f32.gmra.mrb[0].mxu0 %v161
    %v386 = vpop.f32.mrb[0].mxu0
    %v387 = vadd.f32 %v123, %v386
    %v388 = vpop.f32.mrb[0].mxu0
    %v389 = vadd.f32 %v127, %v388
    %390 = vmatprep.mubr.f32.mxu0 0.0
    %391 = vmatmul.mubr.f32.gmra.mrb[0].mxu0 %v164
    %v392 = vpop.f32.mrb[0].mxu0
    %v393 = vadd.f32 %v123, %v392
    %v394 = vpop.f32.mrb[0].mxu0
    %v395 = vadd.f32 %v127, %v394
    %396 = vdwg.mxu0
    %397 = vmatprep.subr.mxu0 %v63
    %398 = vmatpush1.msra.mxu0 %v62
    %399 = vmatprep.subr.mxu0 %v74
    %400 = vmatpush1.msra.mxu0 %v73
    %401 = vmatprep.subr.mxu0 %v85
    %402 = vmatpush1.msra.mxu0 %v84
    %403 = vmatprep.subr.mxu0 %v96
    %404 = vmatpush1.msra.mxu0 %v95
    %405 = vmatprep.subr.mxu0 0.0
    %406 = vmatpush1.msra.mxu0 0.0
    %407 = vmatprep.subr.mxu0 0.0
    %408 = vmatpush1.msra.mxu0 0.0
    %409 = vmatprep.subr.mxu0 0.0
    %410 = vmatpush1.msra.mxu0 0.0
    %411 = vmatprep.subr.mxu0 0.0
    %412 = vmatpush1.msra.mxu0 0.0
    %413 = vmatprep.subr.mxu0 0.0
    %414 = vmatpush1.msra.mxu0 0.0
    %415 = vmatprep.subr.mxu0 0.0
    %416 = vmatpush1.msra.mxu0 0.0
    %417 = vmatprep.subr.mxu0 0.0
    %418 = vmatpush1.msra.mxu0 0.0
    %419 = vmatprep.subr.mxu0 0.0
    %420 = vmatpush1.msra.mxu0 0.0
    %421 = vmatprep.subr.mxu0 0.0
    %422 = vmatpush1.msra.mxu0 0.0
    %423 = vmatprep.subr.mxu0 0.0
    %424 = vmatpush1.msra.mxu0 0.0
    %425 = vmatprep.subr.mxu0 0.0
    %426 = vmatpush1.msra.mxu0 0.0
    %427 = vmatprep.subr.mxu0 0.0
    %428 = vmatpush1.msra.mxu0 0.0
    %429 = vmatprep.subr.mxu0 0.0
    %430 = vmatpush1.msra.mxu0 0.0
    %431 = vmatprep.subr.mxu0 0.0
    %432 = vmatpush1.msra.mxu0 0.0
    %433 = vmatprep.subr.mxu0 0.0
    %434 = vmatpush1.msra.mxu0 0.0
    %435 = vmatprep.subr.mxu0 0.0
    %436 = vmatpush1.msra.mxu0 0.0
    %437 = vmatprep.subr.mxu0 0.0
    %438 = vmatpush1.msra.mxu0 0.0
    %439 = vmatprep.subr.mxu0 0.0
    %440 = vmatpush1.msra.mxu0 0.0
    %441 = vmatprep.subr.mxu0 0.0
    %442 = vmatpush1.msra.mxu0 0.0
    %443 = vmatprep.subr.mxu0 0.0
    %444 = vmatpush1.msra.mxu0 0.0
    %445 = vmatprep.subr.mxu0 0.0
    %446 = vmatpush1.msra.mxu0 0.0
    %447 = vmatprep.subr.mxu0 0.0
    %448 = vmatpush1.msra.mxu0 0.0
    %449 = vmatprep.subr.mxu0 0.0
    %450 = vmatpush1.msra.mxu0 0.0
    %451 = vmatprep.subr.mxu0 0.0
    %452 = vmatpush1.msra.mxu0 0.0
    %453 = vmatprep.subr.mxu0 0.0
    %454 = vmatpush1.msra.mxu0 0.0
    %455 = vmatprep.subr.mxu0 0.0
    %456 = vmatpush1.msra.mxu0 0.0
    %457 = vmatprep.subr.mxu0 0.0
    %458 = vmatpush1.msra.mxu0 0.0
    %459 = vmatprep.subr.mxu0 0.0
    %460 = vmatpush1.msra.mxu0 0.0
    %461 = vmatprep.mubr.f32.mxu0 0.0
    %462 = vmatmul.mubr.f32.gmra.mrb[0].mxu0 %v161
    %v463 = vpop.f32.mrb[0].mxu0
    %v464 = vadd.f32 %v131, %v463
    %v465 = vpop.f32.mrb[0].mxu0
    %v466 = vadd.f32 %v135, %v465
    %467 = vmatprep.mubr.f32.mxu0 0.0
    %468 = vmatmul.mubr.f32.gmra.mrb[0].mxu0 %v164
    %v469 = vpop.f32.mrb[0].mxu0
    %v470 = vadd.f32 %v131, %v469
    %v471 = vpop.f32.mrb[0].mxu0
    %v472 = vadd.f32 %v135, %v471
    %473 = vdwg.mxu0
    %474 = vmatprep.subr.mxu0 %v65
    %475 = vmatpush1.msra.mxu0 %v64
    %476 = vmatprep.subr.mxu0 %v76
    %477 = vmatpush1.msra.mxu0 %v75
    %478 = vmatprep.subr.mxu0 %v87
    %479 = vmatpush1.msra.mxu0 %v86
    %480 = vmatprep.subr.mxu0 %v98
    %481 = vmatpush1.msra.mxu0 %v97
    %482 = vmatprep.subr.mxu0 0.0
    %483 = vmatpush1.msra.mxu0 0.0
    %484 = vmatprep.subr.mxu0 0.0
    %485 = vmatpush1.msra.mxu0 0.0
    %486 = vmatprep.subr.mxu0 0.0
    %487 = vmatpush1.msra.mxu0 0.0
    %488 = vmatprep.subr.mxu0 0.0
    %489 = vmatpush1.msra.mxu0 0.0
    %490 = vmatprep.subr.mxu0 0.0
    %491 = vmatpush1.msra.mxu0 0.0
    %492 = vmatprep.subr.mxu0 0.0
    %493 = vmatpush1.msra.mxu0 0.0
    %494 = vmatprep.subr.mxu0 0.0
    %495 = vmatpush1.msra.mxu0 0.0
    %496 = vmatprep.subr.mxu0 0.0
    %497 = vmatpush1.msra.mxu0 0.0
    %498 = vmatprep.subr.mxu0 0.0
    %499 = vmatpush1.msra.mxu0 0.0
    %500 = vmatprep.subr.mxu0 0.0
    %501 = vmatpush1.msra.mxu0 0.0
    %502 = vmatprep.subr.mxu0 0.0
    %503 = vmatpush1.msra.mxu0 0.0
    %504 = vmatprep.subr.mxu0 0.0
    %505 = vmatpush1.msra.mxu0 0.0
    %506 = vmatprep.subr.mxu0 0.0
    %507 = vmatpush1.msra.mxu0 0.0
    %508 = vmatprep.subr.mxu0 0.0
    %509 = vmatpush1.msra.mxu0 0.0
    %510 = vmatprep.subr.mxu0 0.0
    %511 = vmatpush1.msra.mxu0 0.0
    %512 = vmatprep.subr.mxu0 0.0
    %513 = vmatpush1.msra.mxu0 0.0
    %514 = vmatprep.subr.mxu0 0.0
    %515 = vmatpush1.msra.mxu0 0.0
    %516 = vmatprep.subr.mxu0 0.0
    %517 = vmatpush1.msra.mxu0 0.0
    %518 = vmatprep.subr.mxu0 0.0
    %519 = vmatpush1.msra.mxu0 0.0
    %520 = vmatprep.subr.mxu0 0.0
    %521 = vmatpush1.msra.mxu0 0.0
    %522 = vmatprep.subr.mxu0 0.0
    %523 = vmatpush1.msra.mxu0 0.0
    %524 = vmatprep.subr.mxu0 0.0
    %525 = vmatpush1.msra.mxu0 0.0
    %526 = vmatprep.subr.mxu0 0.0
    %527 = vmatpush1.msra.mxu0 0.0
    %528 = vmatprep.subr.mxu0 0.0
    %529 = vmatpush1.msra.mxu0 0.0
    %530 = vmatprep.subr.mxu0 0.0
    %531 = vmatpush1.msra.mxu0 0.0
    %532 = vmatprep.subr.mxu0 0.0
    %533 = vmatpush1.msra.mxu0 0.0
    %534 = vmatprep.subr.mxu0 0.0
    %535 = vmatpush1.msra.mxu0 0.0
    %536 = vmatprep.subr.mxu0 0.0
    %537 = vmatpush1.msra.mxu0 0.0
    %538 = vmatprep.mubr.f32.mxu0 0.0
    %539 = vmatmul.mubr.f32.gmra.mrb[0].mxu0 %v161
    %v540 = vpop.f32.mrb[0].mxu0
    %v541 = vadd.f32 %v139, %v540
    %v542 = vpop.f32.mrb[0].mxu0
    %v543 = vadd.f32 %v143, %v542
    %544 = vmatprep.mubr.f32.mxu0 0.0
    %545 = vmatmul.mubr.f32.gmra.mrb[0].mxu0 %v164
    %v546 = vpop.f32.mrb[0].mxu0
    %v547 = vadd.f32 %v139, %v546
    %v548 = vpop.f32.mrb[0].mxu0
    %v549 = vadd.f32 %v143, %v548
    %550 = vdwg.mxu0
    %551 = vmatprep.subr.mxu0 0.0
    %552 = vmatpush1.msra.mxu0 %v66
    %553 = vmatprep.subr.mxu0 0.0
    %554 = vmatpush1.msra.mxu0 %v77
    %555 = vmatprep.subr.mxu0 0.0
    %556 = vmatpush1.msra.mxu0 %v88
    %557 = vmatprep.subr.mxu0 0.0
    %558 = vmatpush1.msra.mxu0 %v99
    %559 = vmatprep.subr.mxu0 0.0
    %560 = vmatpush1.msra.mxu0 0.0
    %561 = vmatprep.subr.mxu0 0.0
    %562 = vmatpush1.msra.mxu0 0.0
    %563 = vmatprep.subr.mxu0 0.0
    %564 = vmatpush1.msra.mxu0 0.0
    %565 = vmatprep.subr.mxu0 0.0
    %566 = vmatpush1.msra.mxu0 0.0
    %567 = vmatprep.subr.mxu0 0.0
    %568 = vmatpush1.msra.mxu0 0.0
    %569 = vmatprep.subr.mxu0 0.0
    %570 = vmatpush1.msra.mxu0 0.0
    %571 = vmatprep.subr.mxu0 0.0
    %572 = vmatpush1.msra.mxu0 0.0
    %573 = vmatprep.subr.mxu0 0.0
    %574 = vmatpush1.msra.mxu0 0.0
    %575 = vmatprep.subr.mxu0 0.0
    %576 = vmatpush1.msra.mxu0 0.0
    %577 = vmatprep.subr.mxu0 0.0
    %578 = vmatpush1.msra.mxu0 0.0
    %579 = vmatprep.subr.mxu0 0.0
    %580 = vmatpush1.msra.mxu0 0.0
    %581 = vmatprep.subr.mxu0 0.0
    %582 = vmatpush1.msra.mxu0 0.0
    %583 = vmatprep.subr.mxu0 0.0
    %584 = vmatpush1.msra.mxu0 0.0
    %585 = vmatprep.subr.mxu0 0.0
    %586 = vmatpush1.msra.mxu0 0.0
    %587 = vmatprep.subr.mxu0 0.0
    %588 = vmatpush1.msra.mxu0 0.0
    %589 = vmatprep.subr.mxu0 0.0
    %590 = vmatpush1.msra.mxu0 0.0
    %591 = vmatprep.subr.mxu0 0.0
    %592 = vmatpush1.msra.mxu0 0.0
    %593 = vmatprep.subr.mxu0 0.0
    %594 = vmatpush1.msra.mxu0 0.0
    %595 = vmatprep.subr.mxu0 0.0
    %596 = vmatpush1.msra.mxu0 0.0
    %597 = vmatprep.subr.mxu0 0.0
    %598 = vmatpush1.msra.mxu0 0.0
    %599 = vmatprep.subr.mxu0 0.0
    %600 = vmatpush1.msra.mxu0 0.0
    %601 = vmatprep.subr.mxu0 0.0
    %602 = vmatpush1.msra.mxu0 0.0
    %603 = vmatprep.subr.mxu0 0.0
    %604 = vmatpush1.msra.mxu0 0.0
    %605 = vmatprep.subr.mxu0 0.0
    %606 = vmatpush1.msra.mxu0 0.0
    %607 = vmatprep.subr.mxu0 0.0
    %608 = vmatpush1.msra.mxu0 0.0
    %609 = vmatprep.subr.mxu0 0.0
    %610 = vmatpush1.msra.mxu0 0.0
    %611 = vmatprep.subr.mxu0 0.0
    %612 = vmatpush1.msra.mxu0 0.0
    %613 = vmatprep.subr.mxu0 0.0
    %614 = vmatpush1.msra.mxu0 0.0
    %615 = vmatprep.mubr.f32.mxu0 0.0
    %616 = vmatmul.mubr.f32.gmra.mrb[0].mxu0 %v161
    %v617 = vpop.f32.mrb[0].mxu0
    %v618 = vadd.f32 %v147, %v617
    %v619 = vpop.f32.mrb[0].mxu0
    %620 = vmatprep.mubr.f32.mxu0 0.0
    %621 = vmatmul.mubr.f32.gmra.mrb[0].mxu0 %v164
    %v622 = vpop.f32.mrb[0].mxu0
    %v623 = vadd.f32 %v147, %v622
    %v624 = vpop.f32.mrb[0].mxu0
    %625 = vdwg.mxu0
    %v626 = vmax.f32 %v233, 0.0
    %v627 = vmax.f32 %v235, 0.0
    %v628 = vmax.f32 %v310, 0.0
    %v629 = vmax.f32 %v312, 0.0
    %v630 = vmax.f32 %v387, 0.0
    %v631 = vmax.f32 %v389, 0.0
    %v632 = vmax.f32 %v464, 0.0
    %v633 = vmax.f32 %v466, 0.0
    %v634 = vmax.f32 %v541, 0.0
    %v635 = vmax.f32 %v543, 0.0
    %v636 = vmax.f32 %v618, 0.0
    %v637 = vmax.f32 %v239, 0.0
    %v638 = vmax.f32 %v241, 0.0
    %v639 = vmax.f32 %v316, 0.0
    %v640 = vmax.f32 %v318, 0.0
    %v641 = vmax.f32 %v393, 0.0
    %v642 = vmax.f32 %v395, 0.0
    %v643 = vmax.f32 %v470, 0.0
    %v644 = vmax.f32 %v472, 0.0
    %v645 = vmax.f32 %v547, 0.0
    %v646 = vmax.f32 %v549, 0.0
    %v647 = vmax.f32 %v623, 0.0
    %vm648 = vcmp.ne.f32.partialorder %v233, %v233
    %vm649 = vcmp.ne.f32.partialorder %v235, %v235
    %vm650 = vcmp.ne.f32.partialorder %v310, %v310
    %vm651 = vcmp.ne.f32.partialorder %v312, %v312
    %vm652 = vcmp.ne.f32.partialorder %v387, %v387
    %vm653 = vcmp.ne.f32.partialorder %v389, %v389
    %vm654 = vcmp.ne.f32.partialorder %v464, %v464
    %vm655 = vcmp.ne.f32.partialorder %v466, %v466
    %vm656 = vcmp.ne.f32.partialorder %v541, %v541
    %vm657 = vcmp.ne.f32.partialorder %v543, %v543
    %vm658 = vcmp.ne.f32.partialorder %v618, %v618
    %vm659 = vcmp.ne.f32.partialorder %v239, %v239
    %vm660 = vcmp.ne.f32.partialorder %v241, %v241
    %vm661 = vcmp.ne.f32.partialorder %v316, %v316
    %vm662 = vcmp.ne.f32.partialorder %v318, %v318
    %vm663 = vcmp.ne.f32.partialorder %v393, %v393
    %vm664 = vcmp.ne.f32.partialorder %v395, %v395
    %vm665 = vcmp.ne.f32.partialorder %v470, %v470
    %vm666 = vcmp.ne.f32.partialorder %v472, %v472
    %vm667 = vcmp.ne.f32.partialorder %v547, %v547
    %vm668 = vcmp.ne.f32.partialorder %v549, %v549
    %vm669 = vcmp.ne.f32.partialorder %v623, %v623
    %v670 = vadd.f32 %v233, 0.0
    %v671 = vadd.f32 %v235, 0.0
    %v672 = vadd.f32 %v310, 0.0
    %v673 = vadd.f32 %v312, 0.0
    %v674 = vadd.f32 %v387, 0.0
    %v675 = vadd.f32 %v389, 0.0
    %v676 = vadd.f32 %v464, 0.0
    %v677 = vadd.f32 %v466, 0.0
    %v678 = vadd.f32 %v541, 0.0
    %v679 = vadd.f32 %v543, 0.0
    %v680 = vadd.f32 %v618, 0.0
    %v681 = vadd.f32 %v239, 0.0
    %v682 = vadd.f32 %v241, 0.0
    %v683 = vadd.f32 %v316, 0.0
    %v684 = vadd.f32 %v318, 0.0
    %v685 = vadd.f32 %v393, 0.0
    %v686 = vadd.f32 %v395, 0.0
    %v687 = vadd.f32 %v470, 0.0
    %v688 = vadd.f32 %v472, 0.0
    %v689 = vadd.f32 %v547, 0.0
    %v690 = vadd.f32 %v549, 0.0
    %v691 = vadd.f32 %v623, 0.0
    %v692 = vand.u32 2147483647, %v233
    %v693 = vand.u32 2147483647, %v235
    %v694 = vand.u32 2147483647, %v310
    %v695 = vand.u32 2147483647, %v312
    %v696 = vand.u32 2147483647, %v387
    %v697 = vand.u32 2147483647, %v389
    %v698 = vand.u32 2147483647, %v464
    %v699 = vand.u32 2147483647, %v466
    %v700 = vand.u32 2147483647, %v541
    %v701 = vand.u32 2147483647, %v543
    %v702 = vand.u32 2147483647, %v618
    %v703 = vand.u32 2147483647, %v239
    %v704 = vand.u32 2147483647, %v241
    %v705 = vand.u32 2147483647, %v316
    %v706 = vand.u32 2147483647, %v318
    %v707 = vand.u32 2147483647, %v393
    %v708 = vand.u32 2147483647, %v395
    %v709 = vand.u32 2147483647, %v470
    %v710 = vand.u32 2147483647, %v472
    %v711 = vand.u32 2147483647, %v547
    %v712 = vand.u32 2147483647, %v549
    %v713 = vand.u32 2147483647, %v623
    %v714 = vsub.f32 0.0, %v692
    %v715 = vsub.f32 0.0, %v693
    %v716 = vsub.f32 0.0, %v694
    %v717 = vsub.f32 0.0, %v695
    %v718 = vsub.f32 0.0, %v696
    %v719 = vsub.f32 0.0, %v697
    %v720 = vsub.f32 0.0, %v698
    %v721 = vsub.f32 0.0, %v699
    %v722 = vsub.f32 0.0, %v700
    %v723 = vsub.f32 0.0, %v701
    %v724 = vsub.f32 0.0, %v702
    %v725 = vsub.f32 0.0, %v703
    %v726 = vsub.f32 0.0, %v704
    %v727 = vsub.f32 0.0, %v705
    %v728 = vsub.f32 0.0, %v706
    %v729 = vsub.f32 0.0, %v707
    %v730 = vsub.f32 0.0, %v708
    %v731 = vsub.f32 0.0, %v709
    %v732 = vsub.f32 0.0, %v710
    %v733 = vsub.f32 0.0, %v711
    %v734 = vsub.f32 0.0, %v712
    %v735 = vsub.f32 0.0, %v713
    %v736 = vmul.f32 %v714, 1.442695
    %v737 = vpow.pop %v736
    %v738 = vmul.f32 %v715, 1.442695
    %v739 = vpow.pop %v738
    %v740 = vmul.f32 %v716, 1.442695
    %v741 = vpow.pop %v740
    %v742 = vmul.f32 %v717, 1.442695
    %v743 = vpow.pop %v742
    %v744 = vmul.f32 %v718, 1.442695
    %v745 = vpow.pop %v744
    %v746 = vmul.f32 %v719, 1.442695
    %v747 = vpow.pop %v746
    %v748 = vmul.f32 %v720, 1.442695
    %v749 = vpow.pop %v748
    %v750 = vmul.f32 %v721, 1.442695
    %v751 = vpow.pop %v750
    %v752 = vmul.f32 %v722, 1.442695
    %v753 = vpow.pop %v752
    %v754 = vmul.f32 %v723, 1.442695
    %v755 = vpow.pop %v754
    %v756 = vmul.f32 %v724, 1.442695
    %v757 = vpow.pop %v756
    %v758 = vmul.f32 %v725, 1.442695
    %v759 = vpow.pop %v758
    %v760 = vmul.f32 %v726, 1.442695
    %v761 = vpow.pop %v760
    %v762 = vmul.f32 %v727, 1.442695
    %v763 = vpow.pop %v762
    %v764 = vmul.f32 %v728, 1.442695
    %v765 = vpow.pop %v764
    %v766 = vmul.f32 %v729, 1.442695
    %v767 = vpow.pop %v766
    %v768 = vmul.f32 %v730, 1.442695
    %v769 = vpow.pop %v768
    %v770 = vmul.f32 %v731, 1.442695
    %v771 = vpow.pop %v770
    %v772 = vmul.f32 %v732, 1.442695
    %v773 = vpow.pop %v772
    %v774 = vmul.f32 %v733, 1.442695
    %v775 = vpow.pop %v774
    %v776 = vmul.f32 %v734, 1.442695
    %v777 = vpow.pop %v776
    %v778 = vmul.f32 %v735, 1.442695
    %v779 = vpow.pop %v778
    %v780 = vadd.f32 %v737, 1.0
    %v781 = vlog2.pop %v780
    %v782 = vmul.f32 %v781, 0.6931472
    %v783 = vmul.f32 -0.5, %v737
    %v784 = vadd.f32 %v783, 1.0
    %v785 = vmul.f32 %v784, %v737
    %v786 = vand.u32 2147483647, %v737
    %vm787 = vcmp.lt.f32.partialorder %v786, 0.0004427343
    %v788 = vsel %vm787, %v785, %v782
    %v789 = vadd.f32 %v739, 1.0
    %v790 = vlog2.pop %v789
    %v791 = vmul.f32 %v790, 0.6931472
    %v792 = vmul.f32 -0.5, %v739
    %v793 = vadd.f32 %v792, 1.0
    %v794 = vmul.f32 %v793, %v739
    %v795 = vand.u32 2147483647, %v739
    %vm796 = vcmp.lt.f32.partialorder %v795, 0.0004427343
    %v797 = vsel %vm796, %v794, %v791
    %v798 = vadd.f32 %v741, 1.0
    %v799 = vlog2.pop %v798
    %v800 = vmul.f32 %v799, 0.6931472
    %v801 = vmul.f32 -0.5, %v741
    %v802 = vadd.f32 %v801, 1.0
    %v803 = vmul.f32 %v802, %v741
    %v804 = vand.u32 2147483647, %v741
    %vm805 = vcmp.lt.f32.partialorder %v804, 0.0004427343
    %v806 = vsel %vm805, %v803, %v800
    %v807 = vadd.f32 %v743, 1.0
    %v808 = vlog2.pop %v807
    %v809 = vmul.f32 %v808, 0.6931472
    %v810 = vmul.f32 -0.5, %v743
    %v811 = vadd.f32 %v810, 1.0
    %v812 = vmul.f32 %v811, %v743
    %v813 = vand.u32 2147483647, %v743
    %vm814 = vcmp.lt.f32.partialorder %v813, 0.0004427343
    %v815 = vsel %vm814, %v812, %v809
    %v816 = vadd.f32 %v745, 1.0
    %v817 = vlog2.pop %v816
    %v818 = vmul.f32 %v817, 0.6931472
    %v819 = vmul.f32 -0.5, %v745
    %v820 = vadd.f32 %v819, 1.0
    %v821 = vmul.f32 %v820, %v745
    %v822 = vand.u32 2147483647, %v745
    %vm823 = vcmp.lt.f32.partialorder %v822, 0.0004427343
    %v824 = vsel %vm823, %v821, %v818
    %v825 = vadd.f32 %v747, 1.0
    %v826 = vlog2.pop %v825
    %v827 = vmul.f32 %v826, 0.6931472
    %v828 = vmul.f32 -0.5, %v747
    %v829 = vadd.f32 %v828, 1.0
    %v830 = vmul.f32 %v829, %v747
    %v831 = vand.u32 2147483647, %v747
    %vm832 = vcmp.lt.f32.partialorder %v831, 0.0004427343
    %v833 = vsel %vm832, %v830, %v827
    %v834 = vadd.f32 %v749, 1.0
    %v835 = vlog2.pop %v834
    %v836 = vmul.f32 %v835, 0.6931472
    %v837 = vmul.f32 -0.5, %v749
    %v838 = vadd.f32 %v837, 1.0
    %v839 = vmul.f32 %v838, %v749
    %v840 = vand.u32 2147483647, %v749
    %vm841 = vcmp.lt.f32.partialorder %v840, 0.0004427343
    %v842 = vsel %vm841, %v839, %v836
    %v843 = vadd.f32 %v751, 1.0
    %v844 = vlog2.pop %v843
    %v845 = vmul.f32 %v844, 0.6931472
    %v846 = vmul.f32 -0.5, %v751
    %v847 = vadd.f32 %v846, 1.0
    %v848 = vmul.f32 %v847, %v751
    %v849 = vand.u32 2147483647, %v751
    %vm850 = vcmp.lt.f32.partialorder %v849, 0.0004427343
    %v851 = vsel %vm850, %v848, %v845
    %v852 = vadd.f32 %v753, 1.0
    %v853 = vlog2.pop %v852
    %v854 = vmul.f32 %v853, 0.6931472
    %v855 = vmul.f32 -0.5, %v753
    %v856 = vadd.f32 %v855, 1.0
    %v857 = vmul.f32 %v856, %v753
    %v858 = vand.u32 2147483647, %v753
    %vm859 = vcmp.lt.f32.partialorder %v858, 0.0004427343
    %v860 = vsel %vm859, %v857, %v854
    %v861 = vadd.f32 %v755, 1.0
    %v862 = vlog2.pop %v861
    %v863 = vmul.f32 %v862, 0.6931472
    %v864 = vmul.f32 -0.5, %v755
    %v865 = vadd.f32 %v864, 1.0
    %v866 = vmul.f32 %v865, %v755
    %v867 = vand.u32 2147483647, %v755
    %vm868 = vcmp.lt.f32.partialorder %v867, 0.0004427343
    %v869 = vsel %vm868, %v866, %v863
    %v870 = vadd.f32 %v757, 1.0
    %v871 = vlog2.pop %v870
    %v872 = vmul.f32 %v871, 0.6931472
    %v873 = vmul.f32 -0.5, %v757
    %v874 = vadd.f32 %v873, 1.0
    %v875 = vmul.f32 %v874, %v757
    %v876 = vand.u32 2147483647, %v757
    %vm877 = vcmp.lt.f32.partialorder %v876, 0.0004427343
    %v878 = vsel %vm877, %v875, %v872
    %v879 = vadd.f32 %v759, 1.0
    %v880 = vlog2.pop %v879
    %v881 = vmul.f32 %v880, 0.6931472
    %v882 = vmul.f32 -0.5, %v759
    %v883 = vadd.f32 %v882, 1.0
    %v884 = vmul.f32 %v883, %v759
    %v885 = vand.u32 2147483647, %v759
    %vm886 = vcmp.lt.f32.partialorder %v885, 0.0004427343
    %v887 = vsel %vm886, %v884, %v881
    %v888 = vadd.f32 %v761, 1.0
    %v889 = vlog2.pop %v888
    %v890 = vmul.f32 %v889, 0.6931472
    %v891 = vmul.f32 -0.5, %v761
    %v892 = vadd.f32 %v891, 1.0
    %v893 = vmul.f32 %v892, %v761
    %v894 = vand.u32 2147483647, %v761
    %vm895 = vcmp.lt.f32.partialorder %v894, 0.0004427343
    %v896 = vsel %vm895, %v893, %v890
    %v897 = vadd.f32 %v763, 1.0
    %v898 = vlog2.pop %v897
    %v899 = vmul.f32 %v898, 0.6931472
    %v900 = vmul.f32 -0.5, %v763
    %v901 = vadd.f32 %v900, 1.0
    %v902 = vmul.f32 %v901, %v763
    %v903 = vand.u32 2147483647, %v763
    %vm904 = vcmp.lt.f32.partialorder %v903, 0.0004427343
    %v905 = vsel %vm904, %v902, %v899
    %v906 = vadd.f32 %v765, 1.0
    %v907 = vlog2.pop %v906
    %v908 = vmul.f32 %v907, 0.6931472
    %v909 = vmul.f32 -0.5, %v765
    %v910 = vadd.f32 %v909, 1.0
    %v911 = vmul.f32 %v910, %v765
    %v912 = vand.u32 2147483647, %v765
    %vm913 = vcmp.lt.f32.partialorder %v912, 0.0004427343
    %v914 = vsel %vm913, %v911, %v908
    %v915 = vadd.f32 %v767, 1.0
    %v916 = vlog2.pop %v915
    %v917 = vmul.f32 %v916, 0.6931472
    %v918 = vmul.f32 -0.5, %v767
    %v919 = vadd.f32 %v918, 1.0
    %v920 = vmul.f32 %v919, %v767
    %v921 = vand.u32 2147483647, %v767
    %vm922 = vcmp.lt.f32.partialorder %v921, 0.0004427343
    %v923 = vsel %vm922, %v920, %v917
    %v924 = vadd.f32 %v769, 1.0
    %v925 = vlog2.pop %v924
    %v926 = vmul.f32 %v925, 0.6931472
    %v927 = vmul.f32 -0.5, %v769
    %v928 = vadd.f32 %v927, 1.0
    %v929 = vmul.f32 %v928, %v769
    %v930 = vand.u32 2147483647, %v769
    %vm931 = vcmp.lt.f32.partialorder %v930, 0.0004427343
    %v932 = vsel %vm931, %v929, %v926
    %v933 = vadd.f32 %v771, 1.0
    %v934 = vlog2.pop %v933
    %v935 = vmul.f32 %v934, 0.6931472
    %v936 = vmul.f32 -0.5, %v771
    %v937 = vadd.f32 %v936, 1.0
    %v938 = vmul.f32 %v937, %v771
    %v939 = vand.u32 2147483647, %v771
    %vm940 = vcmp.lt.f32.partialorder %v939, 0.0004427343
    %v941 = vsel %vm940, %v938, %v935
    %v942 = vadd.f32 %v773, 1.0
    %v943 = vlog2.pop %v942
    %v944 = vmul.f32 %v943, 0.6931472
    %v945 = vmul.f32 -0.5, %v773
    %v946 = vadd.f32 %v945, 1.0
    %v947 = vmul.f32 %v946, %v773
    %v948 = vand.u32 2147483647, %v773
    %vm949 = vcmp.lt.f32.partialorder %v948, 0.0004427343
    %v950 = vsel %vm949, %v947, %v944
    %v951 = vadd.f32 %v775, 1.0
    %v952 = vlog2.pop %v951
    %v953 = vmul.f32 %v952, 0.6931472
    %v954 = vmul.f32 -0.5, %v775
    %v955 = vadd.f32 %v954, 1.0
    %v956 = vmul.f32 %v955, %v775
    %v957 = vand.u32 2147483647, %v775
    %vm958 = vcmp.lt.f32.partialorder %v957, 0.0004427343
    %v959 = vsel %vm958, %v956, %v953
    %v960 = vadd.f32 %v777, 1.0
    %v961 = vlog2.pop %v960
    %v962 = vmul.f32 %v961, 0.6931472
    %v963 = vmul.f32 -0.5, %v777
    %v964 = vadd.f32 %v963, 1.0
    %v965 = vmul.f32 %v964, %v777
    %v966 = vand.u32 2147483647, %v777
    %vm967 = vcmp.lt.f32.partialorder %v966, 0.0004427343
    %v968 = vsel %vm967, %v965, %v962
    %v969 = vadd.f32 %v779, 1.0
    %v970 = vlog2.pop %v969
    %v971 = vmul.f32 %v970, 0.6931472
    %v972 = vmul.f32 -0.5, %v779
    %v973 = vadd.f32 %v972, 1.0
    %v974 = vmul.f32 %v973, %v779
    %v975 = vand.u32 2147483647, %v779
    %vm976 = vcmp.lt.f32.partialorder %v975, 0.0004427343
    %v977 = vsel %vm976, %v974, %v971
    %v978 = vadd.f32 %v626, %v788
    %v979 = vadd.f32 %v627, %v797
    %v980 = vadd.f32 %v628, %v806
    %v981 = vadd.f32 %v629, %v815
    %v982 = vadd.f32 %v630, %v824
    %v983 = vadd.f32 %v631, %v833
    %v984 = vadd.f32 %v632, %v842
    %v985 = vadd.f32 %v633, %v851
    %v986 = vadd.f32 %v634, %v860
    %v987 = vadd.f32 %v635, %v869
    %v988 = vadd.f32 %v636, %v878
    %v989 = vadd.f32 %v637, %v887
    %v990 = vadd.f32 %v638, %v896
    %v991 = vadd.f32 %v639, %v905
    %v992 = vadd.f32 %v640, %v914
    %v993 = vadd.f32 %v641, %v923
    %v994 = vadd.f32 %v642, %v932
    %v995 = vadd.f32 %v643, %v941
    %v996 = vadd.f32 %v644, %v950
    %v997 = vadd.f32 %v645, %v959
    %v998 = vadd.f32 %v646, %v968
    %v999 = vadd.f32 %v647, %v977
    %v1000 = vsel %vm648, %v670, %v978
    %v1001 = vsel %vm649, %v671, %v979
    %v1002 = vsel %vm650, %v672, %v980
    %v1003 = vsel %vm651, %v673, %v981
    %v1004 = vsel %vm652, %v674, %v982
    %v1005 = vsel %vm653, %v675, %v983
    %v1006 = vsel %vm654, %v676, %v984
    %v1007 = vsel %vm655, %v677, %v985
    %v1008 = vsel %vm656, %v678, %v986
    %v1009 = vsel %vm657, %v679, %v987
    %v1010 = vsel %vm658, %v680, %v988
    %v1011 = vsel %vm659, %v681, %v989
    %v1012 = vsel %vm660, %v682, %v990
    %v1013 = vsel %vm661, %v683, %v991
    %v1014 = vsel %vm662, %v684, %v992
    %v1015 = vsel %vm663, %v685, %v993
    %v1016 = vsel %vm664, %v686, %v994
    %v1017 = vsel %vm665, %v687, %v995
    %v1018 = vsel %vm666, %v688, %v996
    %v1019 = vsel %vm667, %v689, %v997
    %v1020 = vsel %vm668, %v690, %v998
    %v1021 = vsel %vm669, %v691, %v999
    %v1022 = vadd.f32 %v1000, 1e-06
    %v1023 = vadd.f32 %v1001, 1e-06
    %v1024 = vadd.f32 %v1002, 1e-06
    %v1025 = vadd.f32 %v1003, 1e-06
    %v1026 = vadd.f32 %v1004, 1e-06
    %v1027 = vadd.f32 %v1005, 1e-06
    %v1028 = vadd.f32 %v1006, 1e-06
    %v1029 = vadd.f32 %v1007, 1e-06
    %v1030 = vadd.f32 %v1008, 1e-06
    %v1031 = vadd.f32 %v1009, 1e-06
    %v1032 = vadd.f32 %v1010, 1e-06
    %v1033 = vadd.f32 %v1011, 1e-06
    %v1034 = vadd.f32 %v1012, 1e-06
    %v1035 = vadd.f32 %v1013, 1e-06
    %v1036 = vadd.f32 %v1014, 1e-06
    %v1037 = vadd.f32 %v1015, 1e-06
    %v1038 = vadd.f32 %v1016, 1e-06
    %v1039 = vadd.f32 %v1017, 1e-06
    %v1040 = vadd.f32 %v1018, 1e-06
    %v1041 = vadd.f32 %v1019, 1e-06
    %v1042 = vadd.f32 %v1020, 1e-06
    %v1043 = vadd.f32 %v1021, 1e-06
    %1044 = vst [vmem:[#allocation8] sm:$0xff] %v1022
    %1045 = vst [vmem:[#allocation8 + $0x8] sm:$0xff] %v1023
    %1046 = vst [vmem:[#allocation8 + $0x10] sm:$0xff] %v1024
    %1047 = vst [vmem:[#allocation8 + $0x18] sm:$0xff] %v1025
    %1048 = vst [vmem:[#allocation8 + $0x20] sm:$0xff] %v1026
    %1049 = vst [vmem:[#allocation8 + $0x28] sm:$0xff] %v1027
    %1050 = vst [vmem:[#allocation8 + $0x30] sm:$0xff] %v1028
    %1051 = vst [vmem:[#allocation8 + $0x38] sm:$0xff] %v1029
    %1052 = vst [vmem:[#allocation8 + $0x40] sm:$0xff] %v1030
    %1053 = vst [vmem:[#allocation8 + $0x48] sm:$0xff] %v1031
    %vm1054 = vcmask 351232
    %1055 = vst.msk [vmem:[#allocation8 + $0x50] sm:$0xff] %vm1054, %v1032
    %1056 = vst [vmem:[#allocation8 + $0x58] sm:$0xff] %v1033
    %1057 = vst [vmem:[#allocation8 + $0x60] sm:$0xff] %v1034
    %1058 = vst [vmem:[#allocation8 + $0x68] sm:$0xff] %v1035
    %1059 = vst [vmem:[#allocation8 + $0x70] sm:$0xff] %v1036
    %1060 = vst [vmem:[#allocation8 + $0x78] sm:$0xff] %v1037
    %1061 = vst [vmem:[#allocation8 + $0x80] sm:$0xff] %v1038
    %1062 = vst [vmem:[#allocation8 + $0x88] sm:$0xff] %v1039
    %1063 = vst [vmem:[#allocation8 + $0x90] sm:$0xff] %v1040
    %1064 = vst [vmem:[#allocation8 + $0x98] sm:$0xff] %v1041
    %1065 = vst [vmem:[#allocation8 + $0xa0] sm:$0xff] %v1042
    %1066 = vst.msk [vmem:[#allocation8 + $0xa8] sm:$0xff] %vm1054, %v1043
    // Predicated region
    $region26: #{tpu_custom_call.1} parent=1 // pred_check
      _
    $region27: #{tpu_custom_call.1} parent=1 // pred_check_branch
      %1068 = sbr.rel (0) target = $region29
    $region28: #{tpu_custom_call.1} parent=1 // pred_region
      %s1070 = ssub.s32 2816, 2816
      %1071 = vsyncadd [#allocation4], %s1070
      %s1072 = sshll.u32 [#allocation8], 4
      %s1073 = int_to_ptr.vmem [resolvable:$true] %s1072
      %1078 = dma.vmem_to_hbm [thread:$0]  %s1073, 2816, %s3, [#allocation4], 1408, 1408, 88
    $region29: #{tpu_custom_call.1} parent=1 // pred_fallthru
      _
    // Predicated region
    $region30: #{tpu_custom_call.1} parent=1 // pred_check
      _
    $region31: #{tpu_custom_call.1} parent=1 // pred_check_branch
      %1080 = sbr.rel (0) target = $region33
    $region32: #{tpu_custom_call.1} parent=1 // pred_region
      %1081 = dma.done [#allocation4], 2816
    $region33: #{tpu_custom_call.1} parent=1 // pred_fallthru
      _
    %1082 = vsyncpa [#allocation3], 1
    %1083 = vsyncpa [#allocation6], 1
    %1084 = vsyncpa [#allocation4], 1

</llo_original>
